<compile_context>
chip_gen: v7x
topology: tpu7x:2x2x1
jax: 0.10.0
libtpu: 0.0.40
codegen_flags: <defaults>
</compile_context>

<pallas_src>
import functools

import jax
import jax.numpy as jnp
import numpy as np
from jax.experimental import pallas as pl
from jax.experimental.pallas import tpu as pltpu

LEAKY_SLOPE = 0.01
LN_EPS = 1e-5
LANE = 128
_VMEM_BUDGET = 40 * 1024 * 1024       # conservative: fits v7x (64 MiB physical)
_VMEM_LIMIT = 48 * 1024 * 1024        # raise scoped limit above 16/32 MiB defaults

# TODO(synk): dropout_rate > 0 is not implemented (module default is 0 -> identity).


def _round_up(n, m):
    return m * ((n + m - 1) // m)


def _leaky_relu(h):
    return jnp.where(h >= 0, h, LEAKY_SLOPE * h)


def _row_layernorm(h, w, b, d_true, eps):
    """Per-row LayerNorm over last axis; only the first d_true columns are valid."""
    d_pad = h.shape[-1]
    if d_true == d_pad:
        mean = jnp.mean(h, axis=-1, keepdims=True)
        centered = h - mean
        var = jnp.mean(centered * centered, axis=-1, keepdims=True)  # unbiased=False
    else:
        inv_n = jnp.float32(1.0 / d_true)
        mean = jnp.sum(h, axis=-1, keepdims=True) * inv_n      # padded cols are zero
        col = jax.lax.broadcasted_iota(jnp.int32, h.shape, dimension=1)
        centered = jnp.where(col < d_true, h - mean, 0.0)
        var = jnp.sum(centered * centered, axis=-1, keepdims=True) * inv_n
    out = centered * jax.lax.rsqrt(var + eps)
    return out * w + b


def _residual_block_kernel(has_projection, d_in, d_exp, *refs):
    if has_projection:
        (x_ref, ln1w_ref, ln1b_ref, we_ref, be_ref,
         ln2w_ref, ln2b_ref, ws_ref, bs_ref, wp_ref, bp_ref, out_ref) = refs
    else:
        (x_ref, ln1w_ref, ln1b_ref, we_ref, be_ref,
         ln2w_ref, ln2b_ref, ws_ref, bs_ref, out_ref) = refs
        wp_ref = bp_ref = None

    x = x_ref[...].astype(jnp.float32)

    # norm1 + LeakyReLU (f32)
    h = _row_layernorm(x, ln1w_ref[...], ln1b_ref[...], d_in, LN_EPS)
    h = _leaky_relu(h)

    # expand_linear: bf16 operands, f32 accumulation on the MXU
    h = jnp.dot(h.astype(jnp.bfloat16), we_ref[...],
                preferred_element_type=jnp.float32) + be_ref[...]

    # norm2 + LeakyReLU (f32)
    h = _row_layernorm(h, ln2w_ref[...], ln2b_ref[...], d_exp, LN_EPS)
    h = _leaky_relu(h)

    # shrink_linear
    h = jnp.dot(h.astype(jnp.bfloat16), ws_ref[...],
                preferred_element_type=jnp.float32) + bs_ref[...]

    # residual: re-read the x tile (still resident in VMEM) instead of keeping
    # it live across the whole body.
    identity = x_ref[...].astype(jnp.float32)
    if has_projection:
        identity = jnp.dot(identity.astype(jnp.bfloat16), wp_ref[...],
                           preferred_element_type=jnp.float32) + bp_ref[...]
    out_ref[...] = (h + identity).astype(out_ref.dtype)


def _default_tile_m(n_rows):
    # Large tiles amortize the ~0.35us per-grid-step overhead, but keep at
    # least 2 grid steps so ("parallel",) can shard across v7x's 2 TCs.
    if n_rows <= 16:
        return _round_up(max(n_rows, 8), 8)
    half = _round_up((n_rows + 1) // 2, 8)
    return min(512, half)


def _vmem_bytes(tile_m, d_in_p, d_exp_p, d_out_p, has_projection):
    act = 2 * tile_m * (d_in_p + d_out_p) * 4                   # pipelined x / out (f32)
    wts = 2 * 2 * (d_in_p * d_exp_p + d_exp_p * d_out_p)        # bf16 weights, 2 buffers
    if has_projection:
        wts += 2 * 2 * d_in_p * d_out_p
    vecs = 2 * 4 * 2 * (d_in_p + d_exp_p + d_out_p)             # ln/bias rows
    live = 4 * tile_m * max(d_in_p, d_exp_p) * 4                # in-kernel temporaries
    return act + wts + vecs + live


def residual_block(x, params, *, tile_m=None):
    """x: [N, input_dim] float32.  params: dict of arrays (see init_params)."""
    N, d_in = x.shape
    d_exp = params["we"].shape[1]
    d_out = params["ws"].shape[1]
    has_projection = params["wp"] is not None

    # Lane-dense padded feature dims (zeros; masked LN keeps numerics exact).
    d_in_p = _round_up(d_in, LANE)
    d_exp_p = _round_up(d_exp, LANE)
    d_out_p = _round_up(d_out, LANE)

    if tile_m is None:
        tile_m = _default_tile_m(N)
    tile_m = _round_up(tile_m, 8)
    while (tile_m > 8 and
           _vmem_bytes(tile_m, d_in_p, d_exp_p, d_out_p, has_projection) > _VMEM_BUDGET):
        tile_m = max(8, _round_up(tile_m // 2, 8))

    n_pad = _round_up(N, tile_m)

    def pad2(a, rows, cols):
        return jnp.pad(a, ((0, rows - a.shape[0]), (0, cols - a.shape[1])))

    x_p = pad2(x, n_pad, d_in_p)
    ln1w = pad2(params["ln1_w"], 1, d_in_p)
    ln1b = pad2(params["ln1_b"], 1, d_in_p)
    we = pad2(params["we"], d_in_p, d_exp_p)        # bf16
    be = pad2(params["be"], 1, d_exp_p)
    ln2w = pad2(params["ln2_w"], 1, d_exp_p)
    ln2b = pad2(params["ln2_b"], 1, d_exp_p)
    ws = pad2(params["ws"], d_exp_p, d_out_p)       # bf16
    bs = pad2(params["bs"], 1, d_out_p)

    full = lambda r, c: pl.BlockSpec((r, c), lambda i: (0, 0))

    in_specs = [
        pl.BlockSpec((tile_m, d_in_p), lambda i: (i, 0)),   # x
        full(1, d_in_p),                                    # ln1 weight
        full(1, d_in_p),                                    # ln1 bias
        full(d_in_p, d_exp_p),                              # expand W (bf16)
        full(1, d_exp_p),                                   # expand b
        full(1, d_exp_p),                                   # ln2 weight
        full(1, d_exp_p),                                   # ln2 bias
        full(d_exp_p, d_out_p),                             # shrink W (bf16)
        full(1, d_out_p),                                   # shrink b
    ]
    args = [x_p, ln1w, ln1b, we, be, ln2w, ln2b, ws, bs]

    if has_projection:
        wp = pad2(params["wp"], d_in_p, d_out_p)            # bf16
        bp = pad2(params["bp"], 1, d_out_p)
        in_specs += [full(d_in_p, d_out_p), full(1, d_out_p)]
        args += [wp, bp]

    kernel = functools.partial(_residual_block_kernel, has_projection, d_in, d_exp)

    out_p = pl.pallas_call(
        kernel,
        out_shape=jax.ShapeDtypeStruct((n_pad, d_out_p), x.dtype),
        grid_spec=pltpu.PrefetchScalarGridSpec(
            num_scalar_prefetch=0,
            grid=(n_pad // tile_m,),
            in_specs=in_specs,
            out_specs=pl.BlockSpec((tile_m, d_out_p), lambda i: (i, 0)),
        ),
        compiler_params=pltpu.CompilerParams(
            dimension_semantics=("parallel",),
            vmem_limit_bytes=_VMEM_LIMIT),
    )(*args)

    return out_p[:N, :d_out]


def init_params(key, input_dim, output_dim, expand_dim):
    """Deterministic synthetic parameters (matches the shapes in __init__).

    Linear weights are stored [in, out] in bf16 (MXU operands); biases and
    LayerNorm params stay f32.
    """
    ks = jax.random.split(key, 6)
    params = {
        "ln1_w": jnp.ones((1, input_dim), jnp.float32),
        "ln1_b": jnp.zeros((1, input_dim), jnp.float32),
        "we": (jax.random.normal(ks[0], (input_dim, expand_dim), jnp.float32) * 0.1
               ).astype(jnp.bfloat16),
        "be": jax.random.normal(ks[1], (1, expand_dim), jnp.float32) * 0.1,
        "ln2_w": jnp.ones((1, expand_dim), jnp.float32),
        "ln2_b": jnp.zeros((1, expand_dim), jnp.float32),
        "ws": (jax.random.normal(ks[2], (expand_dim, output_dim), jnp.float32) * 0.1
               ).astype(jnp.bfloat16),
        "bs": jax.random.normal(ks[3], (1, output_dim), jnp.float32) * 0.1,
    }
    if input_dim != output_dim:
        params["wp"] = (jax.random.normal(ks[4], (input_dim, output_dim), jnp.float32)
                        * 0.1).astype(jnp.bfloat16)
        params["bp"] = jax.random.normal(ks[5], (1, output_dim), jnp.float32) * 0.1
    else:
        params["wp"] = None
        params["bp"] = None
    return params


def residual_block_ref(x, params):
    """Pure-JAX f32 reference matching the PyTorch forward (dropout_rate=0)."""
    identity = x
    h = _row_layernorm(x, params["ln1_w"], params["ln1_b"], x.shape[-1], LN_EPS)
    h = _leaky_relu(h)
    h = h @ params["we"].astype(jnp.float32) + params["be"]
    h = _row_layernorm(h, params["ln2_w"], params["ln2_b"], h.shape[-1], LN_EPS)
    h = _leaky_relu(h)
    h = h @ params["ws"].astype(jnp.float32) + params["bs"]
    if params["wp"] is not None:
        identity = identity @ params["wp"].astype(jnp.float32) + params["bp"]
    return h + identity


if __name__ == "__main__":
    key = jax.random.PRNGKey(0)
    k_x1, k_p1, k_x2, k_p2 = jax.random.split(key, 4)

    # Case 1: projection path (input_dim != output_dim), 2 graphs, 64 nodes.
    N1, d_in1, d_exp1, d_out1 = 64, 32, 64, 16
    x1 = jax.random.normal(k_x1, (N1, d_in1), jnp.float32)
    p1 = init_params(k_p1, d_in1, d_out1, d_exp1)
    out1 = jax.block_until_ready(residual_block(x1, p1))
    ref1 = residual_block_ref(x1, p1)
    np.testing.assert_allclose(np.asarray(out1), np.asarray(ref1),
                               rtol=2e-2, atol=2e-2)

    # Case 2: identity residual (input_dim == output_dim) with ragged N.
    N2, d_in2, d_exp2, d_out2 = 50, 32, 48, 32
    x2 = jax.random.normal(k_x2, (N2, d_in2), jnp.float32)
    p2 = init_params(k_p2, d_in2, d_out2, d_exp2)
    out2 = jax.block_until_ready(residual_block(x2, p2))
    ref2 = residual_block_ref(x2, p2)
    np.testing.assert_allclose(np.asarray(out2), np.asarray(ref2),
                               rtol=2e-2, atol=2e-2)

    print("KERNEL_OK")
</pallas_src>

<mosaic_0001>
module attributes {stable_mosaic.version = 11 : i64} {
  func.func @_residual_block_kernel(%arg0: i32, %arg1: memref<32x128xf32, #tpu.memory_space<vmem>>, %arg2: memref<1x128xf32, #tpu.memory_space<vmem>>, %arg3: memref<1x128xf32, #tpu.memory_space<vmem>>, %arg4: memref<128x128xbf16, #tpu.memory_space<vmem>>, %arg5: memref<1x128xf32, #tpu.memory_space<vmem>>, %arg6: memref<1x128xf32, #tpu.memory_space<vmem>>, %arg7: memref<1x128xf32, #tpu.memory_space<vmem>>, %arg8: memref<128x128xbf16, #tpu.memory_space<vmem>>, %arg9: memref<1x128xf32, #tpu.memory_space<vmem>>, %arg10: memref<128x128xbf16, #tpu.memory_space<vmem>>, %arg11: memref<1x128xf32, #tpu.memory_space<vmem>>, %arg12: memref<32x128xf32, #tpu.memory_space<vmem>>) attributes {dimension_semantics = [#tpu.dimension_semantics<parallel>], iteration_bounds = array<i64: 2>, scalar_prefetch = 0 : i64, scratch_operands = 0 : i64, tpu.core_type = #tpu.core_type<tc>, window_params = [{transform_indices = @transform_0, window_bounds = array<i64: 32, 128>}, {pipeline_mode = #tpu.pipeline_mode<synchronous>, transform_indices = @transform_1, window_bounds = array<i64: 1, 128>}, {pipeline_mode = #tpu.pipeline_mode<synchronous>, transform_indices = @transform_2, window_bounds = array<i64: 1, 128>}, {pipeline_mode = #tpu.pipeline_mode<synchronous>, transform_indices = @transform_3, window_bounds = array<i64: 128, 128>}, {pipeline_mode = #tpu.pipeline_mode<synchronous>, transform_indices = @transform_4, window_bounds = array<i64: 1, 128>}, {pipeline_mode = #tpu.pipeline_mode<synchronous>, transform_indices = @transform_5, window_bounds = array<i64: 1, 128>}, {pipeline_mode = #tpu.pipeline_mode<synchronous>, transform_indices = @transform_6, window_bounds = array<i64: 1, 128>}, {pipeline_mode = #tpu.pipeline_mode<synchronous>, transform_indices = @transform_7, window_bounds = array<i64: 128, 128>}, {pipeline_mode = #tpu.pipeline_mode<synchronous>, transform_indices = @transform_8, window_bounds = array<i64: 1, 128>}, {pipeline_mode = #tpu.pipeline_mode<synchronous>, transform_indices = @transform_9, window_bounds = array<i64: 128, 128>}, {pipeline_mode = #tpu.pipeline_mode<synchronous>, transform_indices = @transform_10, window_bounds = array<i64: 1, 128>}, {transform_indices = @transform_11, window_bounds = array<i64: 32, 128>}]} {
    %c0 = arith.constant 0 : index
    %c0_0 = arith.constant 0 : index
    %0 = vector.load %arg1[%c0, %c0_0] : memref<32x128xf32, #tpu.memory_space<vmem>>, vector<32x128xf32>
    %c0_1 = arith.constant 0 : index
    %c0_2 = arith.constant 0 : index
    %1 = vector.load %arg2[%c0_1, %c0_2] : memref<1x128xf32, #tpu.memory_space<vmem>>, vector<1x128xf32>
    %c0_3 = arith.constant 0 : index
    %c0_4 = arith.constant 0 : index
    %2 = vector.load %arg3[%c0_3, %c0_4] : memref<1x128xf32, #tpu.memory_space<vmem>>, vector<1x128xf32>
    %cst = arith.constant dense<0.000000e+00> : vector<32xf32>
    %3 = vector.multi_reduction <add>, %0, %cst [1] : vector<32x128xf32> to vector<32xf32>
    %4 = vector.shape_cast %3 : vector<32xf32> to vector<32x1xf32>
    %cst_5 = arith.constant 3.125000e-02 : f32
    %5 = vector.broadcast %cst_5 : f32 to vector<32x1xf32>
    %6 = arith.mulf %4, %5 : vector<32x1xf32>
    %7 = tpu.iota {dimensions = array<i32: 1>} : vector<32x128xi32>
    %c32_i32 = arith.constant 32 : i32
    %8 = vector.broadcast %c32_i32 : i32 to vector<32x128xi32>
    %9 = arith.cmpi slt, %7, %8 : vector<32x128xi32>
    %10 = vector.broadcast %6 : vector<32x1xf32> to vector<32x128xf32>
    %11 = arith.subf %0, %10 : vector<32x128xf32>
    %cst_6 = arith.constant 0.000000e+00 : f32
    %12 = vector.broadcast %cst_6 : f32 to vector<32x128xf32>
    %13 = arith.select %9, %11, %12 : vector<32x128xi1>, vector<32x128xf32>
    %14 = arith.mulf %13, %13 : vector<32x128xf32>
    %cst_7 = arith.constant dense<0.000000e+00> : vector<32xf32>
    %15 = vector.multi_reduction <add>, %14, %cst_7 [1] : vector<32x128xf32> to vector<32xf32>
    %16 = vector.shape_cast %15 : vector<32xf32> to vector<32x1xf32>
    %cst_8 = arith.constant 3.125000e-02 : f32
    %17 = vector.broadcast %cst_8 : f32 to vector<32x1xf32>
    %18 = arith.mulf %16, %17 : vector<32x1xf32>
    %cst_9 = arith.constant 9.99999974E-6 : f32
    %19 = vector.broadcast %cst_9 : f32 to vector<32x1xf32>
    %20 = arith.addf %18, %19 : vector<32x1xf32>
    %21 = math.rsqrt %20 : vector<32x1xf32>
    %22 = vector.broadcast %21 : vector<32x1xf32> to vector<32x128xf32>
    %23 = arith.mulf %13, %22 : vector<32x128xf32>
    %24 = vector.broadcast %1 : vector<1x128xf32> to vector<32x128xf32>
    %25 = arith.mulf %23, %24 : vector<32x128xf32>
    %26 = vector.broadcast %2 : vector<1x128xf32> to vector<32x128xf32>
    %27 = arith.addf %25, %26 : vector<32x128xf32>
    %cst_10 = arith.constant 0.000000e+00 : f32
    %28 = vector.broadcast %cst_10 : f32 to vector<32x128xf32>
    %29 = arith.cmpf oge, %27, %28 : vector<32x128xf32>
    %cst_11 = arith.constant 0.00999999977 : f32
    %30 = vector.broadcast %cst_11 : f32 to vector<32x128xf32>
    %31 = arith.mulf %30, %27 : vector<32x128xf32>
    %32 = arith.select %29, %27, %31 : vector<32x128xi1>, vector<32x128xf32>
    %33 = arith.truncf %32 : vector<32x128xf32> to vector<32x128xbf16>
    %c0_12 = arith.constant 0 : index
    %c0_13 = arith.constant 0 : index
    %34 = vector.load %arg4[%c0_12, %c0_13] : memref<128x128xbf16, #tpu.memory_space<vmem>>, vector<128x128xbf16>
    %cst_14 = arith.constant dense<0.000000e+00> : vector<32x128xf32>
    %35 = tpu.matmul %33, %34, %cst_14 {dimension_numbers = #tpu.dot_dimension_numbers<[1], [0], [0], [1], [0, 0, 1, 1], [], []>} : vector<32x128xbf16>, vector<128x128xbf16>, vector<32x128xf32> -> vector<32x128xf32>
    %c0_15 = arith.constant 0 : index
    %c0_16 = arith.constant 0 : index
    %36 = vector.load %arg5[%c0_15, %c0_16] : memref<1x128xf32, #tpu.memory_space<vmem>>, vector<1x128xf32>
    %37 = vector.broadcast %36 : vector<1x128xf32> to vector<32x128xf32>
    %38 = arith.addf %35, %37 : vector<32x128xf32>
    %c0_17 = arith.constant 0 : index
    %c0_18 = arith.constant 0 : index
    %39 = vector.load %arg6[%c0_17, %c0_18] : memref<1x128xf32, #tpu.memory_space<vmem>>, vector<1x128xf32>
    %c0_19 = arith.constant 0 : index
    %c0_20 = arith.constant 0 : index
    %40 = vector.load %arg7[%c0_19, %c0_20] : memref<1x128xf32, #tpu.memory_space<vmem>>, vector<1x128xf32>
    %cst_21 = arith.constant dense<0.000000e+00> : vector<32xf32>
    %41 = vector.multi_reduction <add>, %38, %cst_21 [1] : vector<32x128xf32> to vector<32xf32>
    %42 = vector.shape_cast %41 : vector<32xf32> to vector<32x1xf32>
    %cst_22 = arith.constant 1.562500e-02 : f32
    %43 = vector.broadcast %cst_22 : f32 to vector<32x1xf32>
    %44 = arith.mulf %42, %43 : vector<32x1xf32>
    %45 = tpu.iota {dimensions = array<i32: 1>} : vector<32x128xi32>
    %c64_i32 = arith.constant 64 : i32
    %46 = vector.broadcast %c64_i32 : i32 to vector<32x128xi32>
    %47 = arith.cmpi slt, %45, %46 : vector<32x128xi32>
    %48 = vector.broadcast %44 : vector<32x1xf32> to vector<32x128xf32>
    %49 = arith.subf %38, %48 : vector<32x128xf32>
    %cst_23 = arith.constant 0.000000e+00 : f32
    %50 = vector.broadcast %cst_23 : f32 to vector<32x128xf32>
    %51 = arith.select %47, %49, %50 : vector<32x128xi1>, vector<32x128xf32>
    %52 = arith.mulf %51, %51 : vector<32x128xf32>
    %cst_24 = arith.constant dense<0.000000e+00> : vector<32xf32>
    %53 = vector.multi_reduction <add>, %52, %cst_24 [1] : vector<32x128xf32> to vector<32xf32>
    %54 = vector.shape_cast %53 : vector<32xf32> to vector<32x1xf32>
    %cst_25 = arith.constant 1.562500e-02 : f32
    %55 = vector.broadcast %cst_25 : f32 to vector<32x1xf32>
    %56 = arith.mulf %54, %55 : vector<32x1xf32>
    %cst_26 = arith.constant 9.99999974E-6 : f32
    %57 = vector.broadcast %cst_26 : f32 to vector<32x1xf32>
    %58 = arith.addf %56, %57 : vector<32x1xf32>
    %59 = math.rsqrt %58 : vector<32x1xf32>
    %60 = vector.broadcast %59 : vector<32x1xf32> to vector<32x128xf32>
    %61 = arith.mulf %51, %60 : vector<32x128xf32>
    %62 = vector.broadcast %39 : vector<1x128xf32> to vector<32x128xf32>
    %63 = arith.mulf %61, %62 : vector<32x128xf32>
    %64 = vector.broadcast %40 : vector<1x128xf32> to vector<32x128xf32>
    %65 = arith.addf %63, %64 : vector<32x128xf32>
    %cst_27 = arith.constant 0.000000e+00 : f32
    %66 = vector.broadcast %cst_27 : f32 to vector<32x128xf32>
    %67 = arith.cmpf oge, %65, %66 : vector<32x128xf32>
    %cst_28 = arith.constant 0.00999999977 : f32
    %68 = vector.broadcast %cst_28 : f32 to vector<32x128xf32>
    %69 = arith.mulf %68, %65 : vector<32x128xf32>
    %70 = arith.select %67, %65, %69 : vector<32x128xi1>, vector<32x128xf32>
    %71 = arith.truncf %70 : vector<32x128xf32> to vector<32x128xbf16>
    %c0_29 = arith.constant 0 : index
    %c0_30 = arith.constant 0 : index
    %72 = vector.load %arg8[%c0_29, %c0_30] : memref<128x128xbf16, #tpu.memory_space<vmem>>, vector<128x128xbf16>
    %cst_31 = arith.constant dense<0.000000e+00> : vector<32x128xf32>
    %73 = tpu.matmul %71, %72, %cst_31 {dimension_numbers = #tpu.dot_dimension_numbers<[1], [0], [0], [1], [0, 0, 1, 1], [], []>} : vector<32x128xbf16>, vector<128x128xbf16>, vector<32x128xf32> -> vector<32x128xf32>
    %c0_32 = arith.constant 0 : index
    %c0_33 = arith.constant 0 : index
    %74 = vector.load %arg9[%c0_32, %c0_33] : memref<1x128xf32, #tpu.memory_space<vmem>>, vector<1x128xf32>
    %75 = vector.broadcast %74 : vector<1x128xf32> to vector<32x128xf32>
    %76 = arith.addf %73, %75 : vector<32x128xf32>
    %c0_34 = arith.constant 0 : index
    %c0_35 = arith.constant 0 : index
    %77 = vector.load %arg1[%c0_34, %c0_35] : memref<32x128xf32, #tpu.memory_space<vmem>>, vector<32x128xf32>
    %78 = arith.truncf %77 : vector<32x128xf32> to vector<32x128xbf16>
    %c0_36 = arith.constant 0 : index
    %c0_37 = arith.constant 0 : index
    %79 = vector.load %arg10[%c0_36, %c0_37] : memref<128x128xbf16, #tpu.memory_space<vmem>>, vector<128x128xbf16>
    %cst_38 = arith.constant dense<0.000000e+00> : vector<32x128xf32>
    %80 = tpu.matmul %78, %79, %cst_38 {dimension_numbers = #tpu.dot_dimension_numbers<[1], [0], [0], [1], [0, 0, 1, 1], [], []>} : vector<32x128xbf16>, vector<128x128xbf16>, vector<32x128xf32> -> vector<32x128xf32>
    %c0_39 = arith.constant 0 : index
    %c0_40 = arith.constant 0 : index
    %81 = vector.load %arg11[%c0_39, %c0_40] : memref<1x128xf32, #tpu.memory_space<vmem>>, vector<1x128xf32>
    %82 = vector.broadcast %81 : vector<1x128xf32> to vector<32x128xf32>
    %83 = arith.addf %80, %82 : vector<32x128xf32>
    %84 = arith.addf %76, %83 : vector<32x128xf32>
    %c0_41 = arith.constant 0 : index
    %c0_42 = arith.constant 0 : index
    %85 = vector.load %arg12[%c0_41, %c0_42] : memref<32x128xf32, #tpu.memory_space<vmem>>, vector<32x128xf32>
    tpu.vector_store %arg12[%c0_41, %c0_42], %84 {strides = array<i32>} : memref<32x128xf32, #tpu.memory_space<vmem>>, vector<32x128xf32>,
    return
  }
  func.func @transform_0(%arg0: i32) -> (i32, i32) {
    %c0_i32 = arith.constant 0 : i32
    %c0_i32_0 = arith.constant 0 : i32
    return %arg0, %c0_i32 : i32, i32
  }
  func.func @transform_1(%arg0: i32) -> (i32, i32) {
    %c0_i32 = arith.constant 0 : i32
    %c0_i32_0 = arith.constant 0 : i32
    %c0_i32_1 = arith.constant 0 : i32
    return %c0_i32, %c0_i32_0 : i32, i32
  }
  func.func @transform_2(%arg0: i32) -> (i32, i32) {
    %c0_i32 = arith.constant 0 : i32
    %c0_i32_0 = arith.constant 0 : i32
    %c0_i32_1 = arith.constant 0 : i32
    return %c0_i32, %c0_i32_0 : i32, i32
  }
  func.func @transform_3(%arg0: i32) -> (i32, i32) {
    %c0_i32 = arith.constant 0 : i32
    %c0_i32_0 = arith.constant 0 : i32
    %c0_i32_1 = arith.constant 0 : i32
    return %c0_i32, %c0_i32_0 : i32, i32
  }
  func.func @transform_4(%arg0: i32) -> (i32, i32) {
    %c0_i32 = arith.constant 0 : i32
    %c0_i32_0 = arith.constant 0 : i32
    %c0_i32_1 = arith.constant 0 : i32
    return %c0_i32, %c0_i32_0 : i32, i32
  }
  func.func @transform_5(%arg0: i32) -> (i32, i32) {
    %c0_i32 = arith.constant 0 : i32
    %c0_i32_0 = arith.constant 0 : i32
    %c0_i32_1 = arith.constant 0 : i32
    return %c0_i32, %c0_i32_0 : i32, i32
  }
  func.func @transform_6(%arg0: i32) -> (i32, i32) {
    %c0_i32 = arith.constant 0 : i32
    %c0_i32_0 = arith.constant 0 : i32
    %c0_i32_1 = arith.constant 0 : i32
    return %c0_i32, %c0_i32_0 : i32, i32
  }
  func.func @transform_7(%arg0: i32) -> (i32, i32) {
    %c0_i32 = arith.constant 0 : i32
    %c0_i32_0 = arith.constant 0 : i32
    %c0_i32_1 = arith.constant 0 : i32
    return %c0_i32, %c0_i32_0 : i32, i32
  }
  func.func @transform_8(%arg0: i32) -> (i32, i32) {
    %c0_i32 = arith.constant 0 : i32
    %c0_i32_0 = arith.constant 0 : i32
    %c0_i32_1 = arith.constant 0 : i32
    return %c0_i32, %c0_i32_0 : i32, i32
  }
  func.func @transform_9(%arg0: i32) -> (i32, i32) {
    %c0_i32 = arith.constant 0 : i32
    %c0_i32_0 = arith.constant 0 : i32
    %c0_i32_1 = arith.constant 0 : i32
    return %c0_i32, %c0_i32_0 : i32, i32
  }
  func.func @transform_10(%arg0: i32) -> (i32, i32) {
    %c0_i32 = arith.constant 0 : i32
    %c0_i32_0 = arith.constant 0 : i32
    %c0_i32_1 = arith.constant 0 : i32
    return %c0_i32, %c0_i32_0 : i32, i32
  }
  func.func @transform_11(%arg0: i32) -> (i32, i32) {
    %c0_i32 = arith.constant 0 : i32
    %c0_i32_0 = arith.constant 0 : i32
    return %arg0, %c0_i32 : i32, i32
  }
}

</mosaic_0001>

<llo_original>
// kernel: tpu_custom_call.1
$region0: #{tpu_custom_call.1}
  #allocation0 [shape = 'u32[]', space=smem, size = 0x4, offset = 0x4, fixed_abs, tag = 'smem constant byte address 0x4 - core index']
  #allocation1 [shape = 'u32[144,128]{1,0:T(1,128)}', space=vmem, size = 0x12000, scoped, tag = 'internal scratch']
  %s0 = inlined_call_operand.hbm [shape: f32[64,128], index: 0, kind: input, shape index: {}]
  %s1 = inlined_call_operand.vmem [shape: f32[1,128], index: 1, kind: input, shape index: {}]
  %s2 = inlined_call_operand.vmem [shape: f32[1,128], index: 2, kind: input, shape index: {}]
  %s3 = inlined_call_operand.hbm [shape: bf16[128,128], index: 3, kind: input, shape index: {}]
  %s4 = inlined_call_operand.vmem [shape: f32[1,128], index: 4, kind: input, shape index: {}]
  %s5 = inlined_call_operand.vmem [shape: f32[1,128], index: 5, kind: input, shape index: {}]
  %s6 = inlined_call_operand.vmem [shape: f32[1,128], index: 6, kind: input, shape index: {}]
  %s7 = inlined_call_operand.hbm [shape: bf16[128,128], index: 7, kind: input, shape index: {}]
  %s8 = inlined_call_operand.vmem [shape: f32[1,128], index: 8, kind: input, shape index: {}]
  %s9 = inlined_call_operand.hbm [shape: bf16[128,128], index: 9, kind: input, shape index: {}]
  %s10 = inlined_call_operand.vmem [shape: f32[1,128], index: 10, kind: input, shape index: {}]
  %s11 = inlined_call_operand.hbm [shape: f32[64,128], index: 11, kind: output, shape index: {}]
  %s12 = sld [smem:[#allocation0]]
  $region93: #{tpu_custom_call.1} parent=0
    _
  %s14 = ssub.s32 1, %s12
  %s15 = scalar_select 0, %s14, %s12
  $region1: #{tpu_custom_call.1} parent=0
    #allocation2 [shape = 'u8[32768]{0}', space=vmem, size = 0x8000, scoped, tag = 'input window, operand 0']
    #allocation3 [shape = 's32[2]{0}', space=sflag, size = 0x8, scoped, tag = 'scoped memory for tpu_custom_call.1']
    #allocation4 [shape = 's32[2]{0}', space=sflag, size = 0x8, scoped, tag = 'scoped memory for tpu_custom_call.1']
    #allocation5 [shape = 'u8[32768]{0}', space=vmem, size = 0x8000, scoped, tag = 'input window, operand 3, single buffered']
    #allocation6 [shape = 's32[1]{0}', space=sflag, size = 0x4, scoped, tag = 'scoped memory for tpu_custom_call.1']
    #allocation7 [shape = 'u8[32768]{0}', space=vmem, size = 0x8000, scoped, tag = 'input window, operand 7, single buffered']
    #allocation8 [shape = 'u8[32768]{0}', space=vmem, size = 0x8000, scoped, tag = 'input window, operand 9, single buffered']
    #allocation9 [shape = 's32[1]{0}', space=sflag, size = 0x4, scoped, tag = 'scoped memory for tpu_custom_call.1']
    #allocation10 [shape = 'u8[32768]{0}', space=vmem, size = 0x8000, scoped, tag = 'output window, operand 0']
    %16 = vsyncpa [#allocation3], 0
    %s17 = scalar_lea.sflag [#allocation3], 1
    %18 = vsyncpa %s17, 0
    %19 = vsyncpa [#allocation6], 0
    %20 = vsyncpa [#allocation9], 0
    %21 = vsyncpa [#allocation4], 0
    %s22 = scalar_lea.sflag [#allocation4], 1
    %23 = vsyncpa %s22, 0
    loop: start=0, step=1, limit=4
    $region2: #{tpu_custom_call.1} parent=1 // loop_pre_header
      _
    $region3: #{tpu_custom_call.1} parent=1 // loop_header
      %s25 = sphi 0, %s29
      %p26 = scmp.ge.s32.totalorder %s25, 4
      %s35 = sphi 0, %s37
      %s38 = sphi 0, %s35
      %s39 = sphi 0, %s38
      %s55 = sphi 0, %s39
      %s59 = sphi 0, %s59
      %s61 = sphi 0, %s59
      %s62 = sphi 0, %s61
      %s76 = sphi 0, %s62
      %s80 = sphi 0, %s80
      %s82 = sphi 0, %s80
      %s83 = sphi 0, %s82
      %s97 = sphi 0, %s83
      %s101 = sphi 0, %s101
      %s103 = sphi 0, %s101
      %s104 = sphi 0, %s103
      %s118 = sphi 0, %s104
      %s122 = sphi 0, %s122
      %s124 = sphi 0, %s122
      %s125 = sphi 0, %s124
      %s139 = sphi 0, %s125
      %s143 = sphi 0, %s143
      %s145 = sphi 0, %s143
      %s146 = sphi 0, %s145
      %s160 = sphi 0, %s146
      %s164 = sphi 0, %s164
      %s166 = sphi 0, %s164
      %s167 = sphi 0, %s166
      %s181 = sphi 0, %s167
      %s185 = sphi 0, %s185
      %s187 = sphi 0, %s185
      %s188 = sphi 0, %s187
      %s202 = sphi 0, %s188
      %s206 = sphi 0, %s206
      %s208 = sphi 0, %s206
      %s209 = sphi 0, %s208
      %s223 = sphi 0, %s209
      %s227 = sphi 0, %s227
      %s229 = sphi 0, %s227
      %s230 = sphi 0, %s229
      %s244 = sphi 0, %s230
      %s248 = sphi 0, %s248
      %s250 = sphi 0, %s248
      %s251 = sphi 0, %s250
      %s265 = sphi 0, %s251
      %s271 = sphi 0, %s273
      %s274 = sphi 0, %s271
      %s275 = sphi 0, %s274
      %s291 = sphi 0, %s275
    $region4: #{tpu_custom_call.1} parent=1 // loop_header_branch
      %28 = sbr.rel (%p26) target = $region8
    $region5: #{tpu_custom_call.1} parent=1 // loop_body
      %s30 = ssub.s32 %s25, 1
      %s31 = ssub.s32 %s25, 2
      %s32 = sadd.s32 %s25, 1
      %s33 = ssub.s32 %s25, %s32
      %p34 = scmp.eq.s32.totalorder %s33, 0
      %s36 = sadd.s32 %s35, 1
      %s37 = scalar_select %p34, %s35, %s36
      %p40 = pneg %p34
      %p41 = scmp.eq.s32.totalorder %s25, 1
      %p42 = por %p40, %p41
      %p43 = scmp.ne.s32.totalorder %s35, %s38
      %p44 = scmp.eq.s32.totalorder %s25, 0
      %p45 = por %p43, %p44
      %p46 = scmp.ne.s32.totalorder %s35, %s38
      %p47 = scmp.eq.s32.totalorder %s30, 1
      %p48 = por %p46, %p47
      %p49 = scmp.ne.s32.totalorder %s38, %s39
      %p50 = scmp.eq.s32.totalorder %s30, 0
      %p51 = por %p49, %p50
      %p52 = scmp.ne.s32.totalorder %s38, %s39
      %p53 = scmp.eq.s32.totalorder %s31, 1
      %p54 = por %p52, %p53
      %p56 = scmp.ne.s32.totalorder %s39, %s55
      %p57 = scmp.eq.s32.totalorder %s31, 0
      %p58 = por %p56, %p57
      %s60 = sadd.s32 %s59, 1
      %p63 = scmp.eq.s32.totalorder %s25, 1
      %p64 = scmp.ne.s32.totalorder %s59, %s61
      %p65 = scmp.eq.s32.totalorder %s25, 0
      %p66 = por %p64, %p65
      %p67 = scmp.ne.s32.totalorder %s59, %s61
      %p68 = scmp.eq.s32.totalorder %s30, 1
      %p69 = por %p67, %p68
      %p70 = scmp.ne.s32.totalorder %s61, %s62
      %p71 = scmp.eq.s32.totalorder %s30, 0
      %p72 = por %p70, %p71
      %p73 = scmp.ne.s32.totalorder %s61, %s62
      %p74 = scmp.eq.s32.totalorder %s31, 1
      %p75 = por %p73, %p74
      %p77 = scmp.ne.s32.totalorder %s62, %s76
      %p78 = scmp.eq.s32.totalorder %s31, 0
      %p79 = por %p77, %p78
      %s81 = sadd.s32 %s80, 1
      %p84 = scmp.eq.s32.totalorder %s25, 1
      %p85 = scmp.ne.s32.totalorder %s80, %s82
      %p86 = scmp.eq.s32.totalorder %s25, 0
      %p87 = por %p85, %p86
      %p88 = scmp.ne.s32.totalorder %s80, %s82
      %p89 = scmp.eq.s32.totalorder %s30, 1
      %p90 = por %p88, %p89
      %p91 = scmp.ne.s32.totalorder %s82, %s83
      %p92 = scmp.eq.s32.totalorder %s30, 0
      %p93 = por %p91, %p92
      %p94 = scmp.ne.s32.totalorder %s82, %s83
      %p95 = scmp.eq.s32.totalorder %s31, 1
      %p96 = por %p94, %p95
      %p98 = scmp.ne.s32.totalorder %s83, %s97
      %p99 = scmp.eq.s32.totalorder %s31, 0
      %p100 = por %p98, %p99
      %s102 = sadd.s32 %s101, 1
      %p105 = scmp.eq.s32.totalorder %s25, 1
      %p106 = scmp.ne.s32.totalorder %s101, %s103
      %p107 = scmp.eq.s32.totalorder %s25, 0
      %p108 = por %p106, %p107
      %p109 = scmp.ne.s32.totalorder %s101, %s103
      %p110 = scmp.eq.s32.totalorder %s30, 1
      %p111 = por %p109, %p110
      %p112 = scmp.ne.s32.totalorder %s103, %s104
      %p113 = scmp.eq.s32.totalorder %s30, 0
      %p114 = por %p112, %p113
      %p115 = scmp.ne.s32.totalorder %s103, %s104
      %p116 = scmp.eq.s32.totalorder %s31, 1
      %p117 = por %p115, %p116
      %p119 = scmp.ne.s32.totalorder %s104, %s118
      %p120 = scmp.eq.s32.totalorder %s31, 0
      %p121 = por %p119, %p120
      %s123 = sadd.s32 %s122, 1
      %p126 = scmp.eq.s32.totalorder %s25, 1
      %p127 = scmp.ne.s32.totalorder %s122, %s124
      %p128 = scmp.eq.s32.totalorder %s25, 0
      %p129 = por %p127, %p128
      %p130 = scmp.ne.s32.totalorder %s122, %s124
      %p131 = scmp.eq.s32.totalorder %s30, 1
      %p132 = por %p130, %p131
      %p133 = scmp.ne.s32.totalorder %s124, %s125
      %p134 = scmp.eq.s32.totalorder %s30, 0
      %p135 = por %p133, %p134
      %p136 = scmp.ne.s32.totalorder %s124, %s125
      %p137 = scmp.eq.s32.totalorder %s31, 1
      %p138 = por %p136, %p137
      %p140 = scmp.ne.s32.totalorder %s125, %s139
      %p141 = scmp.eq.s32.totalorder %s31, 0
      %p142 = por %p140, %p141
      %s144 = sadd.s32 %s143, 1
      %p147 = scmp.eq.s32.totalorder %s25, 1
      %p148 = scmp.ne.s32.totalorder %s143, %s145
      %p149 = scmp.eq.s32.totalorder %s25, 0
      %p150 = por %p148, %p149
      %p151 = scmp.ne.s32.totalorder %s143, %s145
      %p152 = scmp.eq.s32.totalorder %s30, 1
      %p153 = por %p151, %p152
      %p154 = scmp.ne.s32.totalorder %s145, %s146
      %p155 = scmp.eq.s32.totalorder %s30, 0
      %p156 = por %p154, %p155
      %p157 = scmp.ne.s32.totalorder %s145, %s146
      %p158 = scmp.eq.s32.totalorder %s31, 1
      %p159 = por %p157, %p158
      %p161 = scmp.ne.s32.totalorder %s146, %s160
      %p162 = scmp.eq.s32.totalorder %s31, 0
      %p163 = por %p161, %p162
      %s165 = sadd.s32 %s164, 1
      %p168 = scmp.eq.s32.totalorder %s25, 1
      %p169 = scmp.ne.s32.totalorder %s164, %s166
      %p170 = scmp.eq.s32.totalorder %s25, 0
      %p171 = por %p169, %p170
      %p172 = scmp.ne.s32.totalorder %s164, %s166
      %p173 = scmp.eq.s32.totalorder %s30, 1
      %p174 = por %p172, %p173
      %p175 = scmp.ne.s32.totalorder %s166, %s167
      %p176 = scmp.eq.s32.totalorder %s30, 0
      %p177 = por %p175, %p176
      %p178 = scmp.ne.s32.totalorder %s166, %s167
      %p179 = scmp.eq.s32.totalorder %s31, 1
      %p180 = por %p178, %p179
      %p182 = scmp.ne.s32.totalorder %s167, %s181
      %p183 = scmp.eq.s32.totalorder %s31, 0
      %p184 = por %p182, %p183
      %s186 = sadd.s32 %s185, 1
      %p189 = scmp.eq.s32.totalorder %s25, 1
      %p190 = scmp.ne.s32.totalorder %s185, %s187
      %p191 = scmp.eq.s32.totalorder %s25, 0
      %p192 = por %p190, %p191
      %p193 = scmp.ne.s32.totalorder %s185, %s187
      %p194 = scmp.eq.s32.totalorder %s30, 1
      %p195 = por %p193, %p194
      %p196 = scmp.ne.s32.totalorder %s187, %s188
      %p197 = scmp.eq.s32.totalorder %s30, 0
      %p198 = por %p196, %p197
      %p199 = scmp.ne.s32.totalorder %s187, %s188
      %p200 = scmp.eq.s32.totalorder %s31, 1
      %p201 = por %p199, %p200
      %p203 = scmp.ne.s32.totalorder %s188, %s202
      %p204 = scmp.eq.s32.totalorder %s31, 0
      %p205 = por %p203, %p204
      %s207 = sadd.s32 %s206, 1
      %p210 = scmp.eq.s32.totalorder %s25, 1
      %p211 = scmp.ne.s32.totalorder %s206, %s208
      %p212 = scmp.eq.s32.totalorder %s25, 0
      %p213 = por %p211, %p212
      %p214 = scmp.ne.s32.totalorder %s206, %s208
      %p215 = scmp.eq.s32.totalorder %s30, 1
      %p216 = por %p214, %p215
      %p217 = scmp.ne.s32.totalorder %s208, %s209
      %p218 = scmp.eq.s32.totalorder %s30, 0
      %p219 = por %p217, %p218
      %p220 = scmp.ne.s32.totalorder %s208, %s209
      %p221 = scmp.eq.s32.totalorder %s31, 1
      %p222 = por %p220, %p221
      %p224 = scmp.ne.s32.totalorder %s209, %s223
      %p225 = scmp.eq.s32.totalorder %s31, 0
      %p226 = por %p224, %p225
      %s228 = sadd.s32 %s227, 1
      %p231 = scmp.eq.s32.totalorder %s25, 1
      %p232 = scmp.ne.s32.totalorder %s227, %s229
      %p233 = scmp.eq.s32.totalorder %s25, 0
      %p234 = por %p232, %p233
      %p235 = scmp.ne.s32.totalorder %s227, %s229
      %p236 = scmp.eq.s32.totalorder %s30, 1
      %p237 = por %p235, %p236
      %p238 = scmp.ne.s32.totalorder %s229, %s230
      %p239 = scmp.eq.s32.totalorder %s30, 0
      %p240 = por %p238, %p239
      %p241 = scmp.ne.s32.totalorder %s229, %s230
      %p242 = scmp.eq.s32.totalorder %s31, 1
      %p243 = por %p241, %p242
      %p245 = scmp.ne.s32.totalorder %s230, %s244
      %p246 = scmp.eq.s32.totalorder %s31, 0
      %p247 = por %p245, %p246
      %s249 = sadd.s32 %s248, 1
      %p252 = scmp.eq.s32.totalorder %s25, 1
      %p253 = scmp.ne.s32.totalorder %s248, %s250
      %p254 = scmp.eq.s32.totalorder %s25, 0
      %p255 = por %p253, %p254
      %p256 = scmp.ne.s32.totalorder %s248, %s250
      %p257 = scmp.eq.s32.totalorder %s30, 1
      %p258 = por %p256, %p257
      %p259 = scmp.ne.s32.totalorder %s250, %s251
      %p260 = scmp.eq.s32.totalorder %s30, 0
      %p261 = por %p259, %p260
      %p262 = scmp.ne.s32.totalorder %s250, %s251
      %p263 = scmp.eq.s32.totalorder %s31, 1
      %p264 = por %p262, %p263
      %p266 = scmp.ne.s32.totalorder %s251, %s265
      %p267 = scmp.eq.s32.totalorder %s31, 0
      %p268 = por %p266, %p267
      %s269 = ssub.s32 %s25, %s32
      %p270 = scmp.eq.s32.totalorder %s269, 0
      %s272 = sadd.s32 %s271, 1
      %s273 = scalar_select %p270, %s271, %s272
      %p276 = pneg %p270
      %p277 = scmp.eq.s32.totalorder %s25, 1
      %p278 = por %p276, %p277
      %p279 = scmp.ne.s32.totalorder %s271, %s274
      %p280 = scmp.eq.s32.totalorder %s25, 0
      %p281 = por %p279, %p280
      %p282 = scmp.ne.s32.totalorder %s271, %s274
      %p283 = scmp.eq.s32.totalorder %s30, 1
      %p284 = por %p282, %p283
      %p285 = scmp.ne.s32.totalorder %s274, %s275
      %p286 = scmp.eq.s32.totalorder %s30, 0
      %p287 = por %p285, %p286
      %p288 = scmp.ne.s32.totalorder %s274, %s275
      %p289 = scmp.eq.s32.totalorder %s31, 1
      %p290 = por %p288, %p289
      %p292 = scmp.ne.s32.totalorder %s275, %s291
      %p293 = scmp.eq.s32.totalorder %s31, 0
      %p294 = por %p292, %p293
      %p295 = scmp.le.s32.totalorder 1, %s25
      %p296 = scmp.lt.s32.totalorder %s25, 3
      %p297 = pnand %p295, %p296
      %p298 = pneg %p297
      // Predicated region
      $region9: #{tpu_custom_call.1} parent=5 // pred_check
        _
      $region10: #{tpu_custom_call.1} parent=5 // pred_check_branch
        %300 = sbr.rel (%p297) target = $region12
      $region11: #{tpu_custom_call.1} parent=5 // pred_region
        %s301 = ssub.s32 %s25, 1
        // Predicated region
        $region13: #{tpu_custom_call.1} parent=11 // pred_check
          %p302 = pneg %p72
        $region14: #{tpu_custom_call.1} parent=11 // pred_check_branch
          %304 = sbr.rel (%p302) target = $region16
        $region15: #{tpu_custom_call.1} parent=11 // pred_region
          _
        $region16: #{tpu_custom_call.1} parent=11 // pred_fallthru
          _
        // Predicated region
        $region17: #{tpu_custom_call.1} parent=11 // pred_check
          %p305 = pneg %p93
        $region18: #{tpu_custom_call.1} parent=11 // pred_check_branch
          %307 = sbr.rel (%p305) target = $region20
        $region19: #{tpu_custom_call.1} parent=11 // pred_region
          _
        $region20: #{tpu_custom_call.1} parent=11 // pred_fallthru
          _
        // Predicated region
        $region21: #{tpu_custom_call.1} parent=11 // pred_check
          %p308 = pneg %p114
        $region22: #{tpu_custom_call.1} parent=11 // pred_check_branch
          %310 = sbr.rel (%p308) target = $region24
        $region23: #{tpu_custom_call.1} parent=11 // pred_region
          %s312 = ssub.s32 1024, 1024
          %313 = vsyncadd [#allocation6], %s312
          %s314 = sshll.u32 [#allocation5], 4
          %s315 = int_to_ptr.vmem [resolvable:$true] %s314
          %320 = dma.hbm_to_vmem [thread:$0]  %s3, 1024, %s315, [#allocation6], 64, 64, 4
        $region24: #{tpu_custom_call.1} parent=11 // pred_fallthru
          _
        // Predicated region
        $region25: #{tpu_custom_call.1} parent=11 // pred_check
          %p321 = pneg %p135
        $region26: #{tpu_custom_call.1} parent=11 // pred_check_branch
          %323 = sbr.rel (%p321) target = $region28
        $region27: #{tpu_custom_call.1} parent=11 // pred_region
          _
        $region28: #{tpu_custom_call.1} parent=11 // pred_fallthru
          _
        // Predicated region
        $region29: #{tpu_custom_call.1} parent=11 // pred_check
          %p324 = pneg %p156
        $region30: #{tpu_custom_call.1} parent=11 // pred_check_branch
          %326 = sbr.rel (%p324) target = $region32
        $region31: #{tpu_custom_call.1} parent=11 // pred_region
          _
        $region32: #{tpu_custom_call.1} parent=11 // pred_fallthru
          _
        // Predicated region
        $region33: #{tpu_custom_call.1} parent=11 // pred_check
          %p327 = pneg %p177
        $region34: #{tpu_custom_call.1} parent=11 // pred_check_branch
          %329 = sbr.rel (%p327) target = $region36
        $region35: #{tpu_custom_call.1} parent=11 // pred_region
          _
        $region36: #{tpu_custom_call.1} parent=11 // pred_fallthru
          _
        // Predicated region
        $region37: #{tpu_custom_call.1} parent=11 // pred_check
          %p330 = pneg %p198
        $region38: #{tpu_custom_call.1} parent=11 // pred_check_branch
          %332 = sbr.rel (%p330) target = $region40
        $region39: #{tpu_custom_call.1} parent=11 // pred_region
          %s334 = ssub.s32 1024, 1024
          %335 = vsyncadd [#allocation6], %s334
          %s336 = sshll.u32 [#allocation7], 4
          %s337 = int_to_ptr.vmem [resolvable:$true] %s336
          %342 = dma.hbm_to_vmem [thread:$0]  %s7, 1024, %s337, [#allocation6], 64, 64, 4
        $region40: #{tpu_custom_call.1} parent=11 // pred_fallthru
          _
        // Predicated region
        $region41: #{tpu_custom_call.1} parent=11 // pred_check
          %p343 = pneg %p219
        $region42: #{tpu_custom_call.1} parent=11 // pred_check_branch
          %345 = sbr.rel (%p343) target = $region44
        $region43: #{tpu_custom_call.1} parent=11 // pred_region
          _
        $region44: #{tpu_custom_call.1} parent=11 // pred_fallthru
          _
        // Predicated region
        $region45: #{tpu_custom_call.1} parent=11 // pred_check
          %p346 = pneg %p240
        $region46: #{tpu_custom_call.1} parent=11 // pred_check_branch
          %348 = sbr.rel (%p346) target = $region48
        $region47: #{tpu_custom_call.1} parent=11 // pred_region
          %s350 = ssub.s32 1024, 1024
          %351 = vsyncadd [#allocation9], %s350
          %s352 = sshll.u32 [#allocation8], 4
          %s353 = int_to_ptr.vmem [resolvable:$true] %s352
          %358 = dma.hbm_to_vmem [thread:$0]  %s9, 1024, %s353, [#allocation9], 64, 64, 4
        $region48: #{tpu_custom_call.1} parent=11 // pred_fallthru
          _
        // Predicated region
        $region49: #{tpu_custom_call.1} parent=11 // pred_check
          %p359 = pneg %p261
        $region50: #{tpu_custom_call.1} parent=11 // pred_check_branch
          %361 = sbr.rel (%p359) target = $region52
        $region51: #{tpu_custom_call.1} parent=11 // pred_region
          _
        $region52: #{tpu_custom_call.1} parent=11 // pred_fallthru
          _
      $region12: #{tpu_custom_call.1} parent=5 // pred_fallthru
        _
      %p362 = scmp.lt.s32.totalorder %s25, 2
      // Predicated region
      $region53: #{tpu_custom_call.1} parent=5 // pred_check
        %p363 = pneg %p362
      $region54: #{tpu_custom_call.1} parent=5 // pred_check_branch
        %365 = sbr.rel (%p363) target = $region56
      $region55: #{tpu_custom_call.1} parent=5 // pred_region
        // Predicated region
        $region57: #{tpu_custom_call.1} parent=55 // pred_check
          %p366 = pneg %p45
        $region58: #{tpu_custom_call.1} parent=55 // pred_check_branch
          %368 = sbr.rel (%p366) target = $region60
        $region59: #{tpu_custom_call.1} parent=55 // pred_region
          %s369 = sand.u32 %s35, 1
          %s370 = scalar_lea.sflag [#allocation3], %s369
          %s371 = sand.u32 %s35, 1
          %s372 = smul.addr %s371, 32
          %s373 = scalar_lea.vmem [#allocation2], %s372
          %s374 = smul.u32 4, %s25
          %s376 = ssub.s32 512, 512
          %377 = vsyncadd %s370, %s376
          %s378 = smul.addr %s374, 128
          %s379 = scalar_lea.hbm %s0, %s378
          %s380 = sshll.u32 %s373, 4
          %s381 = int_to_ptr.vmem [resolvable:$true] %s380
          %386 = dma.hbm_to_vmem [thread:$0]  %s379, 512, %s381, %s370, 128, 128, 8
        $region60: #{tpu_custom_call.1} parent=55 // pred_fallthru
          _
      $region56: #{tpu_custom_call.1} parent=5 // pred_fallthru
        _
      %p387 = scmp.le.s32.totalorder 1, %s25
      %p388 = scmp.lt.s32.totalorder %s25, 3
      %p389 = pnand %p387, %p388
      %p390 = pneg %p389
      // Predicated region
      $region61: #{tpu_custom_call.1} parent=5 // pred_check
        _
      $region62: #{tpu_custom_call.1} parent=5 // pred_check_branch
        %392 = sbr.rel (%p389) target = $region64
      $region63: #{tpu_custom_call.1} parent=5 // pred_region
        %s393 = ssub.s32 %s25, 1
        %s394 = sand.u32 %s38, 1
        %s395 = scalar_lea.sflag [#allocation3], %s394
        %s396 = sand.u32 %s38, 1
        %s397 = smul.addr %s396, 32
        %s398 = scalar_lea.vmem [#allocation2], %s397
        // Predicated region
        $region65: #{tpu_custom_call.1} parent=63 // pred_check
          %p399 = pneg %p51
        $region66: #{tpu_custom_call.1} parent=63 // pred_check_branch
          %401 = sbr.rel (%p399) target = $region68
        $region67: #{tpu_custom_call.1} parent=63 // pred_region
          %402 = dma.done %s395, 512
        $region68: #{tpu_custom_call.1} parent=63 // pred_fallthru
          _
        // Predicated region
        $region69: #{tpu_custom_call.1} parent=63 // pred_check
          %p403 = pneg %p114
        $region70: #{tpu_custom_call.1} parent=63 // pred_check_branch
          %405 = sbr.rel (%p403) target = $region72
        $region71: #{tpu_custom_call.1} parent=63 // pred_region
          %406 = dma.done [#allocation6], 1024
        $region72: #{tpu_custom_call.1} parent=63 // pred_fallthru
          _
        // Predicated region
        $region73: #{tpu_custom_call.1} parent=63 // pred_check
          %p407 = pneg %p198
        $region74: #{tpu_custom_call.1} parent=63 // pred_check_branch
          %409 = sbr.rel (%p407) target = $region76
        $region75: #{tpu_custom_call.1} parent=63 // pred_region
          %410 = dma.done [#allocation6], 1024
        $region76: #{tpu_custom_call.1} parent=63 // pred_fallthru
          _
        // Predicated region
        $region77: #{tpu_custom_call.1} parent=63 // pred_check
          %p411 = pneg %p240
        $region78: #{tpu_custom_call.1} parent=63 // pred_check_branch
          %413 = sbr.rel (%p411) target = $region80
        $region79: #{tpu_custom_call.1} parent=63 // pred_region
          %414 = dma.done [#allocation9], 1024
        $region80: #{tpu_custom_call.1} parent=63 // pred_fallthru
          _
        %s415 = sand.u32 %s38, 1
        %s416 = scalar_lea.sflag [#allocation3], %s415
        %s417 = sand.u32 %s38, 1
        %s418 = smul.addr %s417, 32
        %s419 = scalar_lea.vmem [#allocation2], %s418
        %p420 = pneg %p51
        %p421 = pneg %p48
        %p422 = pneg %p72
        %p423 = pneg %p69
        %p424 = pneg %p93
        %p425 = pneg %p90
        %p426 = pneg %p114
        %p427 = pneg %p111
        %p428 = pneg %p135
        %p429 = pneg %p132
        %p430 = pneg %p156
        %p431 = pneg %p153
        %p432 = pneg %p177
        %p433 = pneg %p174
        %p434 = pneg %p198
        %p435 = pneg %p195
        %p436 = pneg %p219
        %p437 = pneg %p216
        %p438 = pneg %p240
        %p439 = pneg %p237
        %p440 = pneg %p261
        %p441 = pneg %p258
        %p442 = pneg %p287
        %p443 = pneg %p284
        %s444 = sand.u32 %s274, 1
        %s445 = scalar_lea.sflag [#allocation4], %s444
        %s446 = sand.u32 %s274, 1
        %s447 = smul.addr %s446, 32
        %s448 = scalar_lea.vmem [#allocation10], %s447
        %s449 = smul.u32 4, %s30
        %s450 = smul.u32 4, %s30
        %v452 = vld [vmem:[%s398] sm:$0xff]
        %v453 = vld [vmem:[%s398 + $0x8] sm:$0xff]
        %v454 = vld [vmem:[%s398 + $0x10] sm:$0xff]
        %v455 = vld [vmem:[%s398 + $0x18] sm:$0xff]
        %v456 = vld [vmem:[%s1] sm:$0x1]
        %v457 = vld [vmem:[%s2] sm:$0x1]
        %458 = vadd.xlane.f32.xlu0 %v452
        %v459 = vpop.xlane.xlu0 %458
        %460 = vadd.xlane.f32.xlu0 %v453
        %v461 = vpop.xlane.xlu0 %460
        %462 = vadd.xlane.f32.xlu0 %v454
        %v463 = vpop.xlane.xlu0 %462
        %464 = vadd.xlane.f32.xlu0 %v455
        %v465 = vpop.xlane.xlu0 %464
        %v466 = vmul.f32 %v459, 0.03125
        %v467 = vmul.f32 %v461, 0.03125
        %v468 = vmul.f32 %v463, 0.03125
        %v469 = vmul.f32 %v465, 0.03125
        %v470 = vlaneseq
        %v471 = vand.u32 %v470, 127
        %vm472 = vcmp.lt.s32.totalorder %v471, 32
        %v473 = vsub.f32 %v452, %v466
        %v474 = vsub.f32 %v453, %v467
        %v475 = vsub.f32 %v454, %v468
        %v476 = vsub.f32 %v455, %v469
        %v477 = vsel %vm472, %v473, 0.0
        %v478 = vsel %vm472, %v474, 0.0
        %v479 = vsel %vm472, %v475, 0.0
        %v480 = vsel %vm472, %v476, 0.0
        %v481 = vmul.f32 %v477, %v477
        %v482 = vmul.f32 %v478, %v478
        %v483 = vmul.f32 %v479, %v479
        %v484 = vmul.f32 %v480, %v480
        %485 = vadd.xlane.f32.xlu0 %v481
        %v486 = vpop.xlane.xlu0 %485
        %487 = vadd.xlane.f32.xlu0 %v482
        %v488 = vpop.xlane.xlu0 %487
        %489 = vadd.xlane.f32.xlu0 %v483
        %v490 = vpop.xlane.xlu0 %489
        %491 = vadd.xlane.f32.xlu0 %v484
        %v492 = vpop.xlane.xlu0 %491
        %v493 = vmul.f32 %v486, 0.03125
        %v494 = vmul.f32 %v488, 0.03125
        %v495 = vmul.f32 %v490, 0.03125
        %v496 = vmul.f32 %v492, 0.03125
        %v497 = vadd.f32 %v493, 1e-05
        %v498 = vadd.f32 %v494, 1e-05
        %v499 = vadd.f32 %v495, 1e-05
        %v500 = vadd.f32 %v496, 1e-05
        %v501 = vrsqrt.pop %v497
        %v502 = vrsqrt.pop %v498
        %v503 = vrsqrt.pop %v499
        %v504 = vrsqrt.pop %v500
        %v505 = vmul.f32 %v477, %v501
        %v506 = vmul.f32 %v478, %v502
        %v507 = vmul.f32 %v479, %v503
        %v508 = vmul.f32 %v480, %v504
        %v510 = vlaneseq
        %v511 = vshrl.u32 %v510, 7
        %v512 = vsub.s32 0, %v511
        %v513 = vrot.slane %v456, %v512
        %v515 = vmul.f32 %v505, %v513
        %v516 = vmul.f32 %v506, %v513
        %v517 = vmul.f32 %v507, %v513
        %v518 = vmul.f32 %v508, %v513
        %v520 = vlaneseq
        %v521 = vshrl.u32 %v520, 7
        %v522 = vsub.s32 0, %v521
        %v523 = vrot.slane %v457, %v522
        %v525 = vadd.f32 %v515, %v523
        %v526 = vadd.f32 %v516, %v523
        %v527 = vadd.f32 %v517, %v523
        %v528 = vadd.f32 %v518, %v523
        %vm529 = vcmp.ge.f32.partialorder %v525, 0.0
        %vm530 = vcmp.ge.f32.partialorder %v526, 0.0
        %vm531 = vcmp.ge.f32.partialorder %v527, 0.0
        %vm532 = vcmp.ge.f32.partialorder %v528, 0.0
        %v533 = vmul.f32 %v525, 0.01
        %v534 = vmul.f32 %v526, 0.01
        %v535 = vmul.f32 %v527, 0.01
        %v536 = vmul.f32 %v528, 0.01
        %v537 = vsel %vm529, %v525, %v533
        %v538 = vsel %vm530, %v526, %v534
        %v539 = vsel %vm531, %v527, %v535
        %v540 = vsel %vm532, %v528, %v536
        %v541 = vpack.c.bf16 %v538, %v537
        %v542 = vpack.c.bf16 %v540, %v539
        %v543 = vld [vmem:[#allocation5] sm:$0xf]
        %v544 = vld [vmem:[#allocation5 + $0x4] sm:$0xf]
        %v545 = vld [vmem:[#allocation5 + $0x8] sm:$0xf]
        %v546 = vld [vmem:[#allocation5 + $0xc] sm:$0xf]
        %v547 = vld [vmem:[#allocation5 + $0x10] sm:$0xf]
        %v548 = vld [vmem:[#allocation5 + $0x14] sm:$0xf]
        %v549 = vld [vmem:[#allocation5 + $0x18] sm:$0xf]
        %v550 = vld [vmem:[#allocation5 + $0x1c] sm:$0xf]
        %v551 = vld [vmem:[#allocation5 + $0x20] sm:$0xf]
        %v552 = vld [vmem:[#allocation5 + $0x24] sm:$0xf]
        %v553 = vld [vmem:[#allocation5 + $0x28] sm:$0xf]
        %v554 = vld [vmem:[#allocation5 + $0x2c] sm:$0xf]
        %v555 = vld [vmem:[#allocation5 + $0x30] sm:$0xf]
        %v556 = vld [vmem:[#allocation5 + $0x34] sm:$0xf]
        %v557 = vld [vmem:[#allocation5 + $0x38] sm:$0xf]
        %v558 = vld [vmem:[#allocation5 + $0x3c] sm:$0xf]
        %v559 = vld [vmem:[%s4] sm:$0x1]
        %v561 = vlaneseq
        %v562 = vshrl.u32 %v561, 7
        %v563 = vsub.s32 0, %v562
        %v564 = vrot.slane %v559, %v563
        %v582 = vunpack.c.l.b16 %v543
        %v583 = vunpack.c.l.b16 %v544
        %v584 = vunpack.c.l.b16 %v545
        %v585 = vunpack.c.l.b16 %v546
        %v586 = vunpack.c.l.b16 %v547
        %v587 = vunpack.c.l.b16 %v548
        %v588 = vunpack.c.l.b16 %v549
        %v589 = vunpack.c.l.b16 %v550
        %v590 = vunpack.c.l.b16 %v551
        %v591 = vunpack.c.l.b16 %v552
        %v592 = vunpack.c.l.b16 %v553
        %v593 = vunpack.c.l.b16 %v554
        %v594 = vunpack.c.l.b16 %v555
        %v595 = vunpack.c.l.b16 %v556
        %v596 = vunpack.c.l.b16 %v557
        %v597 = vunpack.c.l.b16 %v558
        %v598 = vpack.c.b16 %v583, %v582
        %v599 = vpack.c.b16 %v585, %v584
        %v600 = vpack.c.b16 %v587, %v586
        %v601 = vpack.c.b16 %v589, %v588
        %v602 = vpack.c.b16 %v591, %v590
        %v603 = vpack.c.b16 %v593, %v592
        %v604 = vpack.c.b16 %v595, %v594
        %v605 = vpack.c.b16 %v597, %v596
        %614 = vmatprep.subr.bf16.mxu0 0
        %615 = vmatpush1.bf16.msra.mxu0 %v598
        %616 = vmatprep.subr.bf16.mxu0 0
        %617 = vmatpush1.bf16.msra.mxu0 %v599
        %618 = vmatprep.subr.bf16.mxu0 0
        %619 = vmatpush1.bf16.msra.mxu0 %v600
        %620 = vmatprep.subr.bf16.mxu0 0
        %621 = vmatpush1.bf16.msra.mxu0 %v601
        %622 = vmatprep.subr.bf16.mxu0 0
        %623 = vmatpush1.bf16.msra.mxu0 %v602
        %624 = vmatprep.subr.bf16.mxu0 0
        %625 = vmatpush1.bf16.msra.mxu0 %v603
        %626 = vmatprep.subr.bf16.mxu0 0
        %627 = vmatpush1.bf16.msra.mxu0 %v604
        %628 = vmatprep.subr.bf16.mxu0 0
        %629 = vmatpush1.bf16.msra.mxu0 %v605
        %630 = vmatprep.subr.bf16.mxu0 0
        %631 = vmatpush1.bf16.msra.mxu0 0
        %632 = vmatprep.subr.bf16.mxu0 0
        %633 = vmatpush1.bf16.msra.mxu0 0
        %634 = vmatprep.subr.bf16.mxu0 0
        %635 = vmatpush1.bf16.msra.mxu0 0
        %636 = vmatprep.subr.bf16.mxu0 0
        %637 = vmatpush1.bf16.msra.mxu0 0
        %638 = vmatprep.subr.bf16.mxu0 0
        %639 = vmatpush1.bf16.msra.mxu0 0
        %640 = vmatprep.subr.bf16.mxu0 0
        %641 = vmatpush1.bf16.msra.mxu0 0
        %642 = vmatprep.subr.bf16.mxu0 0
        %643 = vmatpush1.bf16.msra.mxu0 0
        %644 = vmatprep.subr.bf16.mxu0 0
        %645 = vmatpush1.bf16.msra.mxu0 0
        %646 = vmatprep.mubr.bf16.mxu0 0
        %647 = vmatmul.mubr.bf16.gmra.mrb[0].mxu0 %v541
        %v648 = vpop.f32.mrb[0].mxu0
        %v649 = vadd.f32 %v564, %v648
        %v650 = vpop.f32.mrb[0].mxu0
        %v651 = vpop.f32.mrb[0].mxu0
        %v652 = vadd.f32 %v564, %v651
        %v653 = vpop.f32.mrb[0].mxu0
        %654 = vmatprep.mubr.bf16.mxu0 0
        %655 = vmatmul.mubr.bf16.gmra.mrb[0].mxu0 %v542
        %v656 = vpop.f32.mrb[0].mxu0
        %v657 = vadd.f32 %v564, %v656
        %v658 = vpop.f32.mrb[0].mxu0
        %v659 = vpop.f32.mrb[0].mxu0
        %v660 = vadd.f32 %v564, %v659
        %v661 = vpop.f32.mrb[0].mxu0
        %662 = vdwg.mxu0
        %v663 = vld [vmem:[%s5] sm:$0x1]
        %v664 = vld [vmem:[%s6] sm:$0x1]
        %665 = vadd.xlane.f32.xlu0 %v649
        %v666 = vpop.xlane.xlu0 %665
        %667 = vadd.xlane.f32.xlu0 %v652
        %v668 = vpop.xlane.xlu0 %667
        %669 = vadd.xlane.f32.xlu0 %v657
        %v670 = vpop.xlane.xlu0 %669
        %671 = vadd.xlane.f32.xlu0 %v660
        %v672 = vpop.xlane.xlu0 %671
        %v673 = vmul.f32 %v666, 0.015625
        %v674 = vmul.f32 %v668, 0.015625
        %v675 = vmul.f32 %v670, 0.015625
        %v676 = vmul.f32 %v672, 0.015625
        %vm677 = vcmp.lt.s32.totalorder %v471, 64
        %v678 = vsub.f32 %v649, %v673
        %v679 = vsub.f32 %v652, %v674
        %v680 = vsub.f32 %v657, %v675
        %v681 = vsub.f32 %v660, %v676
        %v682 = vsel %vm677, %v678, 0.0
        %v683 = vsel %vm677, %v679, 0.0
        %v684 = vsel %vm677, %v680, 0.0
        %v685 = vsel %vm677, %v681, 0.0
        %v686 = vmul.f32 %v682, %v682
        %v687 = vmul.f32 %v683, %v683
        %v688 = vmul.f32 %v684, %v684
        %v689 = vmul.f32 %v685, %v685
        %690 = vadd.xlane.f32.xlu0 %v686
        %v691 = vpop.xlane.xlu0 %690
        %692 = vadd.xlane.f32.xlu0 %v687
        %v693 = vpop.xlane.xlu0 %692
        %694 = vadd.xlane.f32.xlu0 %v688
        %v695 = vpop.xlane.xlu0 %694
        %696 = vadd.xlane.f32.xlu0 %v689
        %v697 = vpop.xlane.xlu0 %696
        %v698 = vmul.f32 %v691, 0.015625
        %v699 = vmul.f32 %v693, 0.015625
        %v700 = vmul.f32 %v695, 0.015625
        %v701 = vmul.f32 %v697, 0.015625
        %v702 = vadd.f32 %v698, 1e-05
        %v703 = vadd.f32 %v699, 1e-05
        %v704 = vadd.f32 %v700, 1e-05
        %v705 = vadd.f32 %v701, 1e-05
        %v706 = vrsqrt.pop %v702
        %v707 = vrsqrt.pop %v703
        %v708 = vrsqrt.pop %v704
        %v709 = vrsqrt.pop %v705
        %v710 = vmul.f32 %v682, %v706
        %v711 = vmul.f32 %v683, %v707
        %v712 = vmul.f32 %v684, %v708
        %v713 = vmul.f32 %v685, %v709
        %v715 = vlaneseq
        %v716 = vshrl.u32 %v715, 7
        %v717 = vsub.s32 0, %v716
        %v718 = vrot.slane %v663, %v717
        %v720 = vmul.f32 %v710, %v718
        %v721 = vmul.f32 %v711, %v718
        %v722 = vmul.f32 %v712, %v718
        %v723 = vmul.f32 %v713, %v718
        %v725 = vlaneseq
        %v726 = vshrl.u32 %v725, 7
        %v727 = vsub.s32 0, %v726
        %v728 = vrot.slane %v664, %v727
        %v730 = vadd.f32 %v720, %v728
        %v731 = vadd.f32 %v721, %v728
        %v732 = vadd.f32 %v722, %v728
        %v733 = vadd.f32 %v723, %v728
        %vm734 = vcmp.ge.f32.partialorder %v730, 0.0
        %vm735 = vcmp.ge.f32.partialorder %v731, 0.0
        %vm736 = vcmp.ge.f32.partialorder %v732, 0.0
        %vm737 = vcmp.ge.f32.partialorder %v733, 0.0
        %v738 = vmul.f32 %v730, 0.01
        %v739 = vmul.f32 %v731, 0.01
        %v740 = vmul.f32 %v732, 0.01
        %v741 = vmul.f32 %v733, 0.01
        %v742 = vsel %vm734, %v730, %v738
        %v743 = vsel %vm735, %v731, %v739
        %v744 = vsel %vm736, %v732, %v740
        %v745 = vsel %vm737, %v733, %v741
        %v746 = vpack.c.bf16 %v743, %v742
        %v747 = vpack.c.bf16 %v745, %v744
        %v748 = vld [vmem:[#allocation7] sm:$0xf]
        %v749 = vld [vmem:[#allocation7 + $0x4] sm:$0xf]
        %v750 = vld [vmem:[#allocation7 + $0x8] sm:$0xf]
        %v751 = vld [vmem:[#allocation7 + $0xc] sm:$0xf]
        %v752 = vld [vmem:[#allocation7 + $0x10] sm:$0xf]
        %v753 = vld [vmem:[#allocation7 + $0x14] sm:$0xf]
        %v754 = vld [vmem:[#allocation7 + $0x18] sm:$0xf]
        %v755 = vld [vmem:[#allocation7 + $0x1c] sm:$0xf]
        %v756 = vld [vmem:[#allocation7 + $0x20] sm:$0xf]
        %v757 = vld [vmem:[#allocation7 + $0x24] sm:$0xf]
        %v758 = vld [vmem:[#allocation7 + $0x28] sm:$0xf]
        %v759 = vld [vmem:[#allocation7 + $0x2c] sm:$0xf]
        %v760 = vld [vmem:[#allocation7 + $0x30] sm:$0xf]
        %v761 = vld [vmem:[#allocation7 + $0x34] sm:$0xf]
        %v762 = vld [vmem:[#allocation7 + $0x38] sm:$0xf]
        %v763 = vld [vmem:[#allocation7 + $0x3c] sm:$0xf]
        %v764 = vld [vmem:[%s8] sm:$0x1]
        %v766 = vlaneseq
        %v767 = vshrl.u32 %v766, 7
        %v768 = vsub.s32 0, %v767
        %v769 = vrot.slane %v764, %v768
        %v787 = vunpack.c.l.b16 %v748
        %v788 = vunpack.c.l.b16 %v749
        %v789 = vunpack.c.l.b16 %v750
        %v790 = vunpack.c.l.b16 %v751
        %v791 = vunpack.c.l.b16 %v752
        %v792 = vunpack.c.l.b16 %v753
        %v793 = vunpack.c.l.b16 %v754
        %v794 = vunpack.c.l.b16 %v755
        %v795 = vunpack.c.l.b16 %v756
        %v796 = vunpack.c.l.b16 %v757
        %v797 = vunpack.c.l.b16 %v758
        %v798 = vunpack.c.l.b16 %v759
        %v799 = vunpack.c.l.b16 %v760
        %v800 = vunpack.c.l.b16 %v761
        %v801 = vunpack.c.l.b16 %v762
        %v802 = vunpack.c.l.b16 %v763
        %v803 = vpack.c.b16 %v788, %v787
        %v804 = vpack.c.b16 %v790, %v789
        %v805 = vpack.c.b16 %v792, %v791
        %v806 = vpack.c.b16 %v794, %v793
        %v807 = vpack.c.b16 %v796, %v795
        %v808 = vpack.c.b16 %v798, %v797
        %v809 = vpack.c.b16 %v800, %v799
        %v810 = vpack.c.b16 %v802, %v801
        %819 = vmatprep.subr.bf16.mxu0 0
        %820 = vmatpush1.bf16.msra.mxu0 %v803
        %821 = vmatprep.subr.bf16.mxu0 0
        %822 = vmatpush1.bf16.msra.mxu0 %v804
        %823 = vmatprep.subr.bf16.mxu0 0
        %824 = vmatpush1.bf16.msra.mxu0 %v805
        %825 = vmatprep.subr.bf16.mxu0 0
        %826 = vmatpush1.bf16.msra.mxu0 %v806
        %827 = vmatprep.subr.bf16.mxu0 0
        %828 = vmatpush1.bf16.msra.mxu0 %v807
        %829 = vmatprep.subr.bf16.mxu0 0
        %830 = vmatpush1.bf16.msra.mxu0 %v808
        %831 = vmatprep.subr.bf16.mxu0 0
        %832 = vmatpush1.bf16.msra.mxu0 %v809
        %833 = vmatprep.subr.bf16.mxu0 0
        %834 = vmatpush1.bf16.msra.mxu0 %v810
        %835 = vmatprep.subr.bf16.mxu0 0
        %836 = vmatpush1.bf16.msra.mxu0 0
        %837 = vmatprep.subr.bf16.mxu0 0
        %838 = vmatpush1.bf16.msra.mxu0 0
        %839 = vmatprep.subr.bf16.mxu0 0
        %840 = vmatpush1.bf16.msra.mxu0 0
        %841 = vmatprep.subr.bf16.mxu0 0
        %842 = vmatpush1.bf16.msra.mxu0 0
        %843 = vmatprep.subr.bf16.mxu0 0
        %844 = vmatpush1.bf16.msra.mxu0 0
        %845 = vmatprep.subr.bf16.mxu0 0
        %846 = vmatpush1.bf16.msra.mxu0 0
        %847 = vmatprep.subr.bf16.mxu0 0
        %848 = vmatpush1.bf16.msra.mxu0 0
        %849 = vmatprep.subr.bf16.mxu0 0
        %850 = vmatpush1.bf16.msra.mxu0 0
        %851 = vmatprep.mubr.bf16.mxu0 0
        %852 = vmatmul.mubr.bf16.gmra.mrb[0].mxu0 %v746
        %v853 = vpop.f32.mrb[0].mxu0
        %v854 = vadd.f32 %v769, %v853
        %v855 = vpop.f32.mrb[0].mxu0
        %v856 = vpop.f32.mrb[0].mxu0
        %v857 = vadd.f32 %v769, %v856
        %v858 = vpop.f32.mrb[0].mxu0
        %859 = vmatprep.mubr.bf16.mxu0 0
        %860 = vmatmul.mubr.bf16.gmra.mrb[0].mxu0 %v747
        %v861 = vpop.f32.mrb[0].mxu0
        %v862 = vadd.f32 %v769, %v861
        %v863 = vpop.f32.mrb[0].mxu0
        %v864 = vpop.f32.mrb[0].mxu0
        %v865 = vadd.f32 %v769, %v864
        %v866 = vpop.f32.mrb[0].mxu0
        %867 = vdwg.mxu0
        %v868 = vpack.c.bf16 %v453, %v452
        %v869 = vpack.c.bf16 %v455, %v454
        %v870 = vld [vmem:[#allocation8] sm:$0xf]
        %v871 = vld [vmem:[#allocation8 + $0x4] sm:$0xf]
        %v872 = vld [vmem:[#allocation8 + $0x8] sm:$0xf]
        %v873 = vld [vmem:[#allocation8 + $0xc] sm:$0xf]
        %v874 = vld [vmem:[#allocation8 + $0x10] sm:$0xf]
        %v875 = vld [vmem:[#allocation8 + $0x14] sm:$0xf]
        %v876 = vld [vmem:[#allocation8 + $0x18] sm:$0xf]
        %v877 = vld [vmem:[#allocation8 + $0x1c] sm:$0xf]
        %v878 = vld [vmem:[#allocation8 + $0x20] sm:$0xf]
        %v879 = vld [vmem:[#allocation8 + $0x24] sm:$0xf]
        %v880 = vld [vmem:[#allocation8 + $0x28] sm:$0xf]
        %v881 = vld [vmem:[#allocation8 + $0x2c] sm:$0xf]
        %v882 = vld [vmem:[#allocation8 + $0x30] sm:$0xf]
        %v883 = vld [vmem:[#allocation8 + $0x34] sm:$0xf]
        %v884 = vld [vmem:[#allocation8 + $0x38] sm:$0xf]
        %v885 = vld [vmem:[#allocation8 + $0x3c] sm:$0xf]
        %v886 = vld [vmem:[%s10] sm:$0x1]
        %v888 = vlaneseq
        %v889 = vshrl.u32 %v888, 7
        %v890 = vsub.s32 0, %v889
        %v891 = vrot.slane %v886, %v890
        %v909 = vunpack.c.l.b16 %v870
        %v910 = vunpack.c.l.b16 %v871
        %v911 = vunpack.c.l.b16 %v872
        %v912 = vunpack.c.l.b16 %v873
        %v913 = vunpack.c.l.b16 %v874
        %v914 = vunpack.c.l.b16 %v875
        %v915 = vunpack.c.l.b16 %v876
        %v916 = vunpack.c.l.b16 %v877
        %v917 = vunpack.c.l.b16 %v878
        %v918 = vunpack.c.l.b16 %v879
        %v919 = vunpack.c.l.b16 %v880
        %v920 = vunpack.c.l.b16 %v881
        %v921 = vunpack.c.l.b16 %v882
        %v922 = vunpack.c.l.b16 %v883
        %v923 = vunpack.c.l.b16 %v884
        %v924 = vunpack.c.l.b16 %v885
        %v925 = vpack.c.b16 %v910, %v909
        %v926 = vpack.c.b16 %v912, %v911
        %v927 = vpack.c.b16 %v914, %v913
        %v928 = vpack.c.b16 %v916, %v915
        %v929 = vpack.c.b16 %v918, %v917
        %v930 = vpack.c.b16 %v920, %v919
        %v931 = vpack.c.b16 %v922, %v921
        %v932 = vpack.c.b16 %v924, %v923
        %941 = vmatprep.subr.bf16.mxu0 0
        %942 = vmatpush1.bf16.msra.mxu0 %v925
        %943 = vmatprep.subr.bf16.mxu0 0
        %944 = vmatpush1.bf16.msra.mxu0 %v926
        %945 = vmatprep.subr.bf16.mxu0 0
        %946 = vmatpush1.bf16.msra.mxu0 %v927
        %947 = vmatprep.subr.bf16.mxu0 0
        %948 = vmatpush1.bf16.msra.mxu0 %v928
        %949 = vmatprep.subr.bf16.mxu0 0
        %950 = vmatpush1.bf16.msra.mxu0 %v929
        %951 = vmatprep.subr.bf16.mxu0 0
        %952 = vmatpush1.bf16.msra.mxu0 %v930
        %953 = vmatprep.subr.bf16.mxu0 0
        %954 = vmatpush1.bf16.msra.mxu0 %v931
        %955 = vmatprep.subr.bf16.mxu0 0
        %956 = vmatpush1.bf16.msra.mxu0 %v932
        %957 = vmatprep.subr.bf16.mxu0 0
        %958 = vmatpush1.bf16.msra.mxu0 0
        %959 = vmatprep.subr.bf16.mxu0 0
        %960 = vmatpush1.bf16.msra.mxu0 0
        %961 = vmatprep.subr.bf16.mxu0 0
        %962 = vmatpush1.bf16.msra.mxu0 0
        %963 = vmatprep.subr.bf16.mxu0 0
        %964 = vmatpush1.bf16.msra.mxu0 0
        %965 = vmatprep.subr.bf16.mxu0 0
        %966 = vmatpush1.bf16.msra.mxu0 0
        %967 = vmatprep.subr.bf16.mxu0 0
        %968 = vmatpush1.bf16.msra.mxu0 0
        %969 = vmatprep.subr.bf16.mxu0 0
        %970 = vmatpush1.bf16.msra.mxu0 0
        %971 = vmatprep.subr.bf16.mxu0 0
        %972 = vmatpush1.bf16.msra.mxu0 0
        %973 = vmatprep.mubr.bf16.mxu0 0
        %974 = vmatmul.mubr.bf16.gmra.mrb[0].mxu0 %v868
        %v975 = vpop.f32.mrb[0].mxu0
        %v976 = vadd.f32 %v891, %v975
        %v977 = vpop.f32.mrb[0].mxu0
        %v978 = vpop.f32.mrb[0].mxu0
        %v979 = vadd.f32 %v891, %v978
        %v980 = vpop.f32.mrb[0].mxu0
        %981 = vmatprep.mubr.bf16.mxu0 0
        %982 = vmatmul.mubr.bf16.gmra.mrb[0].mxu0 %v869
        %v983 = vpop.f32.mrb[0].mxu0
        %v984 = vadd.f32 %v891, %v983
        %v985 = vpop.f32.mrb[0].mxu0
        %v986 = vpop.f32.mrb[0].mxu0
        %v987 = vadd.f32 %v891, %v986
        %v988 = vpop.f32.mrb[0].mxu0
        %989 = vdwg.mxu0
        %v990 = vadd.f32 %v854, %v976
        %v991 = vadd.f32 %v857, %v979
        %v992 = vadd.f32 %v862, %v984
        %v993 = vadd.f32 %v865, %v987
        %994 = vst [vmem:[%s448] sm:$0xff] %v990
        %995 = vst [vmem:[%s448 + $0x8] sm:$0xff] %v991
        %996 = vst [vmem:[%s448 + $0x10] sm:$0xff] %v992
        %997 = vst [vmem:[%s448 + $0x18] sm:$0xff] %v993
        %s998 = sand.u32 %s274, 1
        %s999 = scalar_lea.sflag [#allocation4], %s998
        %s1000 = sand.u32 %s274, 1
        %s1001 = smul.addr %s1000, 32
        %s1002 = scalar_lea.vmem [#allocation10], %s1001
        // Predicated region
        $region81: #{tpu_custom_call.1} parent=63 // pred_check
          %p1003 = pneg %p284
        $region82: #{tpu_custom_call.1} parent=63 // pred_check_branch
          %1005 = sbr.rel (%p1003) target = $region84
        $region83: #{tpu_custom_call.1} parent=63 // pred_region
          %s1006 = smul.u32 4, %s30
          %s1008 = ssub.s32 512, 512
          %1009 = vsyncadd %s999, %s1008
          %s1010 = smul.addr %s1006, 128
          %s1011 = scalar_lea.hbm %s11, %s1010
          %s1012 = sshll.u32 %s1002, 4
          %s1013 = int_to_ptr.vmem [resolvable:$true] %s1012
          %1018 = dma.vmem_to_hbm [thread:$0]  %s1013, 512, %s1011, %s999, 128, 128, 8
        $region84: #{tpu_custom_call.1} parent=63 // pred_fallthru
          _
      $region64: #{tpu_custom_call.1} parent=5 // pred_fallthru
        _
      %p1019 = scmp.le.s32.totalorder 2, %s25
      // Predicated region
      $region85: #{tpu_custom_call.1} parent=5 // pred_check
        %p1020 = pneg %p1019
      $region86: #{tpu_custom_call.1} parent=5 // pred_check_branch
        %1022 = sbr.rel (%p1020) target = $region88
      $region87: #{tpu_custom_call.1} parent=5 // pred_region
        %s1023 = ssub.s32 %s25, 2
        // Predicated region
        $region89: #{tpu_custom_call.1} parent=87 // pred_check
          %p1024 = pneg %p290
        $region90: #{tpu_custom_call.1} parent=87 // pred_check_branch
          %1026 = sbr.rel (%p1024) target = $region92
        $region91: #{tpu_custom_call.1} parent=87 // pred_region
          %s1027 = sand.u32 %s275, 1
          %s1028 = scalar_lea.sflag [#allocation4], %s1027
          %s1029 = sand.u32 %s275, 1
          %s1030 = smul.addr %s1029, 32
          %s1031 = scalar_lea.vmem [#allocation10], %s1030
          %1032 = dma.done %s1028, 512
        $region92: #{tpu_custom_call.1} parent=87 // pred_fallthru
          _
      $region88: #{tpu_custom_call.1} parent=5 // pred_fallthru
        _
    $region6: #{tpu_custom_call.1} parent=1 // loop_footer
      %s29 = sadd.s32 1, %s25
    $region7: #{tpu_custom_call.1} parent=1 // loop_footer_branch
      %24 = sbr.rel target = $region3
    $region8: #{tpu_custom_call.1} parent=1 // loop_exit
      _
    %1033 = vsyncpa [#allocation3], 1
    %s1034 = scalar_lea.sflag [#allocation3], 1
    %1035 = vsyncpa %s1034, 1
    %1036 = vsyncpa [#allocation6], 1
    %1037 = vsyncpa [#allocation9], 1
    %1038 = vsyncpa [#allocation4], 1
    %s1039 = scalar_lea.sflag [#allocation4], 1
    %1040 = vsyncpa %s1039, 1

</llo_original>
